<compile_context>
chip_gen: v6e
topology: v6e:2x2x1
jax: 0.10.0
libtpu: 0.0.40
codegen_flags: <defaults>
</compile_context>

<pallas_src>
import functools

import jax
import jax.numpy as jnp
from jax.experimental import pallas as pl
from jax.experimental.pallas import tpu as pltpu


def _round_up(x: int, m: int) -> int:
    return ((x + m - 1) // m) * m


@functools.lru_cache(maxsize=1)
def _vmem_budget_bytes() -> int:
    """Per-generation VMEM budget (leave ~25% headroom for the compiler)."""
    try:
        cap = int(pltpu.get_tpu_info().vmem_capacity_bytes)
    except Exception:
        cap = 64 * 1024 * 1024  # conservative: v7x per-TensorCore VMEM
    return max(32 * 1024 * 1024, min(cap * 3 // 4, 100 * 1024 * 1024))


# --------------------------------------------------------------------------- #
# Kernels
# --------------------------------------------------------------------------- #
def _linear_relu_kernel(x_ref, w_ref, o_ref, *, compute_dtype):
    """Single-K-block path: relu(x @ w) for one (tm, tn) tile, no scratch."""
    x = x_ref[...].astype(compute_dtype)
    o_ref[...] = jnp.maximum(
        jnp.dot(x, w_ref[...], preferred_element_type=jnp.float32), 0.0
    ).astype(o_ref.dtype)


def _linear_relu_acc_kernel(x_ref, w_ref, o_ref, acc_ref, *, compute_dtype):
    """Multi-K path: grid (M, N, K) with K innermost; f32 VMEM accumulator."""
    k = pl.program_id(2)
    part = jnp.dot(
        x_ref[...].astype(compute_dtype),
        w_ref[...],
        preferred_element_type=jnp.float32,
    )

    @pl.when(k == 0)
    def _():
        acc_ref[...] = part          # init with the first dot (no zero-fill pass)

    @pl.when(k > 0)
    def _():
        acc_ref[...] += part

    @pl.when(k == pl.num_programs(2) - 1)
    def _():
        o_ref[...] = jnp.maximum(acc_ref[...], 0.0).astype(o_ref.dtype)


# --------------------------------------------------------------------------- #
# Wrapper
# --------------------------------------------------------------------------- #
def linear_relu(
    x,
    w,
    *,
    compute_dtype=None,
    out_dtype=None,
    tm_max=512,
    tn_max=256,
    tk_max=2048,
):
    """relu(x @ w) as a fused, tiled Pallas TPU kernel.

    x : (n, d_in)        activations (any float dtype; cast inside the kernel)
    w : (d_in, d_out)    pre-transposed nn.Linear weight, stored in compute dtype
    Returns (n, d_out) in out_dtype (defaults to x.dtype).
    """
    n, d_in = x.shape
    d_in2, d_out = w.shape
    assert d_in == d_in2
    if compute_dtype is None:
        compute_dtype = w.dtype
    if out_dtype is None:
        out_dtype = x.dtype

    # ---- tile selection -----------------------------------------------------
    # Last two dims of a block must be multiples of (8, 128) OR equal the full
    # array dim; ragged M / d_out edges are covered by cdiv grids with masked
    # edge blocks (no explicit padding / extra HBM copies).
    tm = n if n <= tm_max else tm_max            # tm_max is a multiple of 8
    tn = d_out if d_out <= tn_max else tn_max    # tn_max is a multiple of 128

    if d_in <= tk_max:
        tk = d_in                                # single K block (common case)
        k_pad = 0
    else:
        tk = tk_max                              # multiple of 128
        k_pad = _round_up(d_in, tk) - d_in       # zero K-pad contributes nothing

    budget = _vmem_budget_bytes()
    out_itemsize = jnp.dtype(out_dtype).itemsize

    def _footprint(tm_, tn_, tk_):
        # double-buffered in/out tiles + (possible) f32 accumulator scratch
        return (
            2 * (tm_ * tk_ * x.dtype.itemsize
                 + tk_ * tn_ * w.dtype.itemsize
                 + tm_ * tn_ * out_itemsize)
            + tm_ * tn_ * 4
        )

    while _footprint(tm, tn, tk) > budget and (tm > 8 or tn > 128):
        if tm > 8:
            tm = max(8, _round_up(tm // 2, 8))
        elif tn > 128:
            tn = max(128, _round_up(tn // 2, 128))

    # ---- rare big-d_in path: zero-pad K so every K block is fully covered ----
    if k_pad:
        # TODO(synk): this pad is one extra HBM copy; only hit when d_in > tk_max.
        x = jnp.pad(x, ((0, 0), (0, k_pad)))
        w = jnp.pad(w, ((0, k_pad), (0, 0)))
    k_blocks = (d_in + k_pad) // tk

    flops = 2 * n * d_in * d_out
    bytes_accessed = (
        n * d_in * x.dtype.itemsize
        + d_in * d_out * w.dtype.itemsize
        + n * d_out * out_itemsize
    )
    cost = pl.CostEstimate(
        flops=flops, transcendentals=0, bytes_accessed=bytes_accessed
    )

    if k_blocks == 1:
        grid = (pl.cdiv(n, tm), pl.cdiv(d_out, tn))
        kernel = functools.partial(
            _linear_relu_kernel, compute_dtype=compute_dtype
        )
        in_specs = [
            pl.BlockSpec((tm, d_in), lambda i, j: (i, 0)),
            pl.BlockSpec((d_in, tn), lambda i, j: (0, j)),
        ]
        out_specs = pl.BlockSpec((tm, tn), lambda i, j: (i, j))
        scratch_shapes = []
        dims = ("parallel", "parallel")
    else:
        grid = (pl.cdiv(n, tm), pl.cdiv(d_out, tn), k_blocks)
        kernel = functools.partial(
            _linear_relu_acc_kernel, compute_dtype=compute_dtype
        )
        in_specs = [
            pl.BlockSpec((tm, tk), lambda i, j, k: (i, k)),
            # weight-stationary w.r.t. the M tile index
            pl.BlockSpec((tk, tn), lambda i, j, k: (k, j)),
        ]
        out_specs = pl.BlockSpec((tm, tn), lambda i, j, k: (i, j))
        scratch_shapes = [pltpu.VMEM((tm, tn), jnp.float32)]
        dims = ("parallel", "parallel", "arbitrary")

    return pl.pallas_call(
        kernel,
        out_shape=jax.ShapeDtypeStruct((n, d_out), out_dtype),
        grid=grid,
        in_specs=in_specs,
        out_specs=out_specs,
        scratch_shapes=scratch_shapes,
        compiler_params=pltpu.CompilerParams(
            dimension_semantics=dims,
            vmem_limit_bytes=budget,
        ),
        cost_estimate=cost,
    )(x, w)


# --------------------------------------------------------------------------- #
# Module
# --------------------------------------------------------------------------- #
class FullyConnectedPallas:
    """JAX/Pallas port of the PyTorch FullyConnected module.

    Defaults mirror the PyTorch module: dropout=0.0 (identity at inference),
    use_bias=False, activation=ReLU, share_weights=False.
    """

    def __init__(
        self,
        input_dim,
        output_dim,
        *,
        share_weights=False,
        compute_dtype=jnp.float32,
        out_dtype=None,
        key=None,
    ):
        self.input_dim = input_dim
        self.output_dim = output_dim
        self.share_weights = share_weights
        self.compute_dtype = compute_dtype
        self.out_dtype = out_dtype
        if key is None:
            key = jax.random.PRNGKey(0)
        k_u, k_i = jax.random.split(key)
        bound = 1.0 / (input_dim ** 0.5)
        # Pre-transposed (input_dim, output_dim) so the kernel computes x @ W.T
        # directly on the MXU.  f32 master copy kept for reference checks.
        self.w_user_t = jax.random.uniform(
            k_u, (input_dim, output_dim), jnp.float32, -bound, bound
        )
        if share_weights:
            self.w_item_t = self.w_user_t
        else:
            self.w_item_t = jax.random.uniform(
                k_i, (input_dim, output_dim), jnp.float32, -bound, bound
            )
        # Weights cast to the compute dtype ONCE here (not per call).
        self.w_user_c = self.w_user_t.astype(compute_dtype)
        self.w_item_c = (
            self.w_user_c if share_weights else self.w_item_t.astype(compute_dtype)
        )
        # TODO(synk): dropout with p>0 (training) and use_bias=True are not
        # implemented; the module defaults (p=0.0, bias=False) make both no-ops.

    def __call__(self, user_inputs, item_inputs):
        # Two launches on the raw inputs: no stack / pad-to-n_max / cast copies
        # in HBM, and share_weights=True reuses a single weight array.
        user_out = linear_relu(
            user_inputs, self.w_user_c,
            compute_dtype=self.compute_dtype, out_dtype=self.out_dtype,
        )
        item_out = linear_relu(
            item_inputs, self.w_item_c,
            compute_dtype=self.compute_dtype, out_dtype=self.out_dtype,
        )
        return user_out, item_out


# --------------------------------------------------------------------------- #
# Self-test
# --------------------------------------------------------------------------- #
if __name__ == "__main__":
    key = jax.random.PRNGKey(0)
    k_user, k_item, k_params = jax.random.split(key, 3)

    num_users, num_items = 8, 12
    input_dim, output_dim = 32, 32

    user_inputs = jax.random.normal(k_user, (num_users, input_dim), jnp.float32)
    item_inputs = jax.random.normal(k_item, (num_items, input_dim), jnp.float32)

    # ---- f32 path (default): bit-accurate against the plain-JAX reference ----
    model = FullyConnectedPallas(input_dim, output_dim, key=k_params)
    user_out, item_out = model(user_inputs, item_inputs)
    jax.block_until_ready((user_out, item_out))

    ref_user = jnp.maximum(user_inputs @ model.w_user_t, 0.0)
    ref_item = jnp.maximum(item_inputs @ model.w_item_t, 0.0)
    assert user_out.shape == (num_users, output_dim)
    assert item_out.shape == (num_items, output_dim)
    assert jnp.allclose(user_out, ref_user, atol=1e-5)
    assert jnp.allclose(item_out, ref_item, atol=1e-5)

    # ---- share_weights=True path (single weight array, no duplicate DMA) -----
    model_sh = FullyConnectedPallas(
        input_dim, output_dim, key=k_params, share_weights=True
    )
    u_sh, i_sh = model_sh(user_inputs, item_inputs)
    jax.block_until_ready((u_sh, i_sh))
    assert jnp.allclose(u_sh, jnp.maximum(user_inputs @ model_sh.w_user_t, 0.0), atol=1e-5)
    assert jnp.allclose(i_sh, jnp.maximum(item_inputs @ model_sh.w_user_t, 0.0), atol=1e-5)

    # ---- bf16 compute + bf16 output path (v6e/v7x), f32 MXU accumulation -----
    model_bf16 = FullyConnectedPallas(
        input_dim, output_dim, key=k_params,
        compute_dtype=jnp.bfloat16, out_dtype=jnp.bfloat16,
    )
    u16, i16 = model_bf16(user_inputs, item_inputs)
    jax.block_until_ready((u16, i16))

    ref_u16 = jnp.maximum(
        jnp.dot(user_inputs.astype(jnp.bfloat16), model_bf16.w_user_c,
                preferred_element_type=jnp.float32), 0.0)
    ref_i16 = jnp.maximum(
        jnp.dot(item_inputs.astype(jnp.bfloat16), model_bf16.w_item_c,
                preferred_element_type=jnp.float32), 0.0)
    assert u16.dtype == jnp.bfloat16 and i16.dtype == jnp.bfloat16
    assert jnp.allclose(u16.astype(jnp.float32), ref_u16, atol=3e-2)
    assert jnp.allclose(i16.astype(jnp.float32), ref_i16, atol=3e-2)

    print("KERNEL_OK")
</pallas_src>

<mosaic_0001>
module attributes {stable_mosaic.version = 11 : i64} {
  func.func @_linear_relu_kernel(%arg0: i32, %arg1: i32, %arg2: memref<8x32xf32, #tpu.memory_space<vmem>>, %arg3: memref<32x32xf32, #tpu.memory_space<vmem>>, %arg4: memref<8x32xf32, #tpu.memory_space<vmem>>) attributes {dimension_semantics = [#tpu.dimension_semantics<parallel>, #tpu.dimension_semantics<parallel>], iteration_bounds = array<i64: 1, 1>, scalar_prefetch = 0 : i64, scratch_operands = 0 : i64, tpu.core_type = #tpu.core_type<tc>, window_params = [{transform_indices = @transform_0, window_bounds = array<i64: 8, 32>}, {transform_indices = @transform_1, window_bounds = array<i64: 32, 32>}, {transform_indices = @transform_2, window_bounds = array<i64: 8, 32>}]} {
    %c0 = arith.constant 0 : index
    %c0_0 = arith.constant 0 : index
    %0 = vector.load %arg2[%c0, %c0_0] : memref<8x32xf32, #tpu.memory_space<vmem>>, vector<8x32xf32>
    %c0_1 = arith.constant 0 : index
    %c0_2 = arith.constant 0 : index
    %1 = vector.load %arg3[%c0_1, %c0_2] : memref<32x32xf32, #tpu.memory_space<vmem>>, vector<32x32xf32>
    %cst = arith.constant dense<0.000000e+00> : vector<8x32xf32>
    %2 = tpu.matmul %0, %1, %cst {dimension_numbers = #tpu.dot_dimension_numbers<[1], [0], [0], [1], [0, 0, 1, 1], [], []>} : vector<8x32xf32>, vector<32x32xf32>, vector<8x32xf32> -> vector<8x32xf32>
    %cst_3 = arith.constant 0.000000e+00 : f32
    %3 = vector.broadcast %cst_3 : f32 to vector<8x32xf32>
    %4 = arith.maximumf %2, %3 : vector<8x32xf32>
    %c0_4 = arith.constant 0 : index
    %c0_5 = arith.constant 0 : index
    %5 = vector.load %arg4[%c0_4, %c0_5] : memref<8x32xf32, #tpu.memory_space<vmem>>, vector<8x32xf32>
    tpu.vector_store %arg4[%c0_4, %c0_5], %4 {strides = array<i32>} : memref<8x32xf32, #tpu.memory_space<vmem>>, vector<8x32xf32>,
    return
  }
  func.func @transform_0(%arg0: i32, %arg1: i32) -> (i32, i32) {
    %c0_i32 = arith.constant 0 : i32
    %c0_i32_0 = arith.constant 0 : i32
    return %arg0, %c0_i32 : i32, i32
  }
  func.func @transform_1(%arg0: i32, %arg1: i32) -> (i32, i32) {
    %c0_i32 = arith.constant 0 : i32
    %c0_i32_0 = arith.constant 0 : i32
    return %c0_i32, %arg1 : i32, i32
  }
  func.func @transform_2(%arg0: i32, %arg1: i32) -> (i32, i32) {
    %c0_i32 = arith.constant 0 : i32
    return %arg0, %arg1 : i32, i32
  }
}

</mosaic_0001>

<llo_original>
// kernel: tpu_custom_call.1
$region0: #{tpu_custom_call.1}
  #allocation0 [shape = 'u32[]', space=smem, size = 0x4, offset = 0x4, fixed_abs, tag = 'smem constant byte address 0x4 - core index']
  #allocation1 [shape = 'u32[144,128]{1,0:T(1,128)}', space=vmem, size = 0x12000, scoped, tag = 'internal scratch']
  %s0 = inlined_call_operand.hbm [shape: f32[8,32], index: 0, kind: input, shape index: {}]
  %s1 = inlined_call_operand.hbm [shape: f32[32,32], index: 1, kind: input, shape index: {}]
  %s2 = inlined_call_operand.hbm [shape: f32[8,32], index: 2, kind: output, shape index: {}]
  %s3 = sld [smem:[#allocation0]]
  $region26: #{tpu_custom_call.1} parent=0
    _
  %s5 = ssub.s32 1, %s3
  %s6 = scalar_select 0, %s5, %s3
  $region1: #{tpu_custom_call.1} parent=0
    #allocation2 [shape = 'u8[4096]{0}', space=vmem, size = 0x1000, scoped, tag = 'input window, operand 0, single buffered']
    #allocation3 [shape = 's32[1]{0}', space=sflag, size = 0x4, scoped, tag = 'scoped memory for tpu_custom_call.1']
    #allocation4 [shape = 's32[1]{0}', space=sflag, size = 0x4, scoped, tag = 'scoped memory for tpu_custom_call.1']
    #allocation5 [shape = 'u8[16384]{0}', space=vmem, size = 0x4000, scoped, tag = 'input window, operand 1, single buffered']
    #allocation6 [shape = 's32[1]{0}', space=sflag, size = 0x4, scoped, tag = 'scoped memory for tpu_custom_call.1']
    #allocation7 [shape = 'u8[4096]{0}', space=vmem, size = 0x1000, scoped, tag = 'output window, operand 0, single buffered']
    %7 = vsyncpa [#allocation3], 0
    %8 = vsyncpa [#allocation6], 0
    %9 = vsyncpa [#allocation4], 0
    // Predicated region
    $region2: #{tpu_custom_call.1} parent=1 // pred_check
      _
    $region3: #{tpu_custom_call.1} parent=1 // pred_check_branch
      %11 = sbr.rel (0) target = $region5
    $region4: #{tpu_custom_call.1} parent=1 // pred_region
      %s13 = ssub.s32 128, 128
      %14 = vsyncadd [#allocation3], %s13
      %s16 = sshll.u32 [#allocation2], 4
      %s17 = int_to_ptr.vmem [resolvable:$true] %s16
      %19 = dma.hbm_to_vmem [thread:$0]  %s0, 128, %s17, [#allocation3]
    $region5: #{tpu_custom_call.1} parent=1 // pred_fallthru
      _
    // Predicated region
    $region6: #{tpu_custom_call.1} parent=1 // pred_check
      _
    $region7: #{tpu_custom_call.1} parent=1 // pred_check_branch
      %21 = sbr.rel (0) target = $region9
    $region8: #{tpu_custom_call.1} parent=1 // pred_region
      %s23 = ssub.s32 512, 512
      %24 = vsyncadd [#allocation6], %s23
      %s25 = sshll.u32 [#allocation5], 4
      %s26 = int_to_ptr.vmem [resolvable:$true] %s25
      %31 = dma.hbm_to_vmem [thread:$0]  %s1, 512, %s26, [#allocation6], 128, 128, 8
    $region9: #{tpu_custom_call.1} parent=1 // pred_fallthru
      _
    // Predicated region
    $region10: #{tpu_custom_call.1} parent=1 // pred_check
      _
    $region11: #{tpu_custom_call.1} parent=1 // pred_check_branch
      %33 = sbr.rel (0) target = $region13
    $region12: #{tpu_custom_call.1} parent=1 // pred_region
      %34 = dma.done [#allocation3], 128
    $region13: #{tpu_custom_call.1} parent=1 // pred_fallthru
      _
    // Predicated region
    $region14: #{tpu_custom_call.1} parent=1 // pred_check
      _
    $region15: #{tpu_custom_call.1} parent=1 // pred_check_branch
      %36 = sbr.rel (0) target = $region17
    $region16: #{tpu_custom_call.1} parent=1 // pred_region
      %37 = dma.done [#allocation6], 512
    $region17: #{tpu_custom_call.1} parent=1 // pred_fallthru
      _
    %v38 = vld [vmem:[#allocation2] sm:$0xff]
    %v39 = vld [vmem:[#allocation5] sm:$0xff]
    %v40 = vld [vmem:[#allocation5 + $0x8] sm:$0xff]
    %v41 = vld [vmem:[#allocation5 + $0x10] sm:$0xff]
    %v42 = vld [vmem:[#allocation5 + $0x18] sm:$0xff]
    %vm43 = vcmask 261120
    %v45 = vsel %vm43, %v38, 0
    %47 = vmatprep.subr.mxu0 0.0
    %48 = vmatpush1.msra.mxu0 0.0
    %49 = vmatprep.subr.mxu0 0.0
    %50 = vmatpush1.msra.mxu0 0.0
    %51 = vmatprep.subr.mxu0 0.0
    %52 = vmatpush1.msra.mxu0 0.0
    %53 = vmatprep.subr.mxu0 0.0
    %54 = vmatpush1.msra.mxu0 0.0
    %55 = vmatprep.subr.mxu0 0.0
    %56 = vmatpush1.msra.mxu0 0.0
    %57 = vmatprep.subr.mxu0 0.0
    %58 = vmatpush1.msra.mxu0 0.0
    %59 = vmatprep.subr.mxu0 0.0
    %60 = vmatpush1.msra.mxu0 0.0
    %61 = vmatprep.subr.mxu0 0.0
    %62 = vmatpush1.msra.mxu0 0.0
    %63 = vmatprep.subr.mxu0 0.0
    %64 = vmatpush1.msra.mxu0 0.0
    %65 = vmatprep.subr.mxu0 0.0
    %66 = vmatpush1.msra.mxu0 0.0
    %67 = vmatprep.subr.mxu0 0.0
    %68 = vmatpush1.msra.mxu0 0.0
    %69 = vmatprep.subr.mxu0 0.0
    %70 = vmatpush1.msra.mxu0 0.0
    %71 = vmatprep.subr.mxu0 0.0
    %72 = vmatpush1.msra.mxu0 %v42
    %73 = vmatprep.subr.mxu0 0.0
    %74 = vmatpush1.msra.mxu0 %v41
    %75 = vmatprep.subr.mxu0 0.0
    %76 = vmatpush1.msra.mxu0 %v40
    %77 = vmatprep.subr.mxu0 0.0
    %78 = vmatpush1.msra.mxu0 %v39
    %79 = vmatprep.subr.mxu0 0.0
    %80 = vmatpush2.msra.mxu0 0.0
    %81 = vmatprep.subr.mxu0 0.0
    %82 = vmatpush2.msra.mxu0 0.0
    %83 = vmatprep.subr.mxu0 0.0
    %84 = vmatpush2.msra.mxu0 0.0
    %85 = vmatprep.subr.mxu0 0.0
    %86 = vmatpush2.msra.mxu0 0.0
    %87 = vmatprep.subr.mxu0 0.0
    %88 = vmatpush2.msra.mxu0 0.0
    %89 = vmatprep.subr.mxu0 0.0
    %90 = vmatpush2.msra.mxu0 0.0
    %91 = vmatprep.subr.mxu0 0.0
    %92 = vmatpush2.msra.mxu0 0.0
    %93 = vmatprep.subr.mxu0 0.0
    %94 = vmatpush2.msra.mxu0 0.0
    %95 = vmatprep.subr.mxu0 0.0
    %96 = vmatpush2.msra.mxu0 0.0
    %97 = vmatprep.subr.mxu0 0.0
    %98 = vmatpush2.msra.mxu0 0.0
    %99 = vmatprep.subr.mxu0 0.0
    %100 = vmatpush2.msra.mxu0 0.0
    %101 = vmatprep.subr.mxu0 0.0
    %102 = vmatpush2.msra.mxu0 0.0
    %103 = vmatprep.subr.mxu0 0.0
    %104 = vmatpush2.msra.mxu0 0.0
    %105 = vmatprep.subr.mxu0 0.0
    %106 = vmatpush2.msra.mxu0 0.0
    %107 = vmatprep.subr.mxu0 0.0
    %108 = vmatpush2.msra.mxu0 0.0
    %109 = vmatprep.subr.mxu0 0.0
    %110 = vmatpush2.msra.mxu0 0.0
    %111 = vmatprep.mubr.f32.mxu0 0.0
    %112 = vmatmul.mubr.f32.gmra.mxu0 %v45
    %v113 = vpop.f32.mrf.mxu0
    %v114 = vadd.f32 0.0, %v113
    %v115 = vpop.f32.mrf.mxu0
    %116 = vdwg.mxu0
    %v117 = vmax.f32 %v114, 0.0
    %118 = vst.msk [vmem:[#allocation7] sm:$0xff] %vm43, %v117
    // Predicated region
    $region18: #{tpu_custom_call.1} parent=1 // pred_check
      _
    $region19: #{tpu_custom_call.1} parent=1 // pred_check_branch
      %120 = sbr.rel (0) target = $region21
    $region20: #{tpu_custom_call.1} parent=1 // pred_region
      %s122 = ssub.s32 128, 128
      %123 = vsyncadd [#allocation4], %s122
      %s125 = sshll.u32 [#allocation7], 4
      %s126 = int_to_ptr.vmem [resolvable:$true] %s125
      %128 = dma.vmem_to_hbm [thread:$0]  %s126, 128, %s2, [#allocation4]
    $region21: #{tpu_custom_call.1} parent=1 // pred_fallthru
      _
    // Predicated region
    $region22: #{tpu_custom_call.1} parent=1 // pred_check
      _
    $region23: #{tpu_custom_call.1} parent=1 // pred_check_branch
      %130 = sbr.rel (0) target = $region25
    $region24: #{tpu_custom_call.1} parent=1 // pred_region
      %131 = dma.done [#allocation4], 128
    $region25: #{tpu_custom_call.1} parent=1 // pred_fallthru
      _
    %132 = vsyncpa [#allocation3], 1
    %133 = vsyncpa [#allocation6], 1
    %134 = vsyncpa [#allocation4], 1

</llo_original>
